<compile_context>
chip_gen: v7x
topology: tpu7x:2x2x1
jax: 0.10.0
libtpu: 0.0.40
codegen_flags: <defaults>
</compile_context>

<pallas_src>
import functools

import jax
import jax.numpy as jnp
from jax.experimental import pallas as pl
from jax.experimental.pallas import tpu as pltpu


def _sha_kernel(x_ref, wkqv_ref, bkqv_ref, wo_ref, bo_ref,
                out_ref, attnw_ref, proj_ref, *, p_pad):
    BB, S, Dq = x_ref.shape
    TQ = out_ref.shape[0]
    Dop = out_ref.shape[2]
    qi = pl.program_id(1)

    # Fused K/Q/V projection for this batch tile — computed once (qi == 0)
    # and cached in VMEM scratch, reused by every query tile of the tile.
    @pl.when(qi == 0)
    def _():
        x = x_ref[...].reshape(BB * S, Dq)
        proj = jnp.dot(x, wkqv_ref[...], preferred_element_type=jnp.float32)
        proj = proj + bkqv_ref[...]
        proj_ref[...] = proj.reshape(BB, S, 3 * p_pad)

    # Q for this query tile is just a row-slice of the cached projection
    # (q-scaling was folded into the Q columns of wkqv by the wrapper).
    q_start = pl.multiple_of(qi * TQ, TQ)
    q = proj_ref[:, pl.ds(q_start, TQ), 0:p_pad]              # (BB, TQ, Pp)
    k = proj_ref[:, :, p_pad:2 * p_pad]                       # (BB, S,  Pp)
    v = proj_ref[:, :, 2 * p_pad:3 * p_pad]                    # (BB, S,  Pp)

    # Attention scores over the full source axis — softmax exact per row.
    scores = jnp.einsum('bqd,bkd->bqk', q, k,
                        preferred_element_type=jnp.float32)    # (BB, TQ, S)
    m = jnp.max(scores, axis=-1, keepdims=True)
    e = jnp.exp(scores - m)
    denom = jnp.sum(e, axis=-1, keepdims=True)
    # exact reciprocal: attn weights are a returned output checked at 1e-5
    probs = e * pl.reciprocal(denom, approx=False)

    # Emit attention weights directly in (tgt, bsz, src) layout — removes the
    # wrapper-side B*T^2 HBM transpose.
    attnw_ref[...] = jnp.transpose(probs, (1, 0, 2)).astype(attnw_ref.dtype)

    # Context + output projection, also emitted (tgt, bsz, out) directly.
    ctx = jnp.einsum('bqk,bkd->bqd', probs, v,
                     preferred_element_type=jnp.float32)       # (BB, TQ, Pp)
    out = (jnp.dot(ctx.reshape(BB * TQ, p_pad), wo_ref[...],
                   preferred_element_type=jnp.float32) + bo_ref[...])
    out_ref[...] = jnp.transpose(out.reshape(BB, TQ, Dop),
                                 (1, 0, 2)).astype(out_ref.dtype)


def _round_up(x, m):
    return ((x + m - 1) // m) * m


def _tq_candidates(T, cap=512):
    """Query-tile sizes: divisors of T that are multiples of 8 (or T itself)."""
    cands = [d for d in range(min(T, cap), 0, -1)
             if T % d == 0 and (d % 8 == 0 or d == T)]
    return cands or [T]


def _bb_candidates(B):
    """Batch-tile sizes: full B first (block == full dim), else mult-of-8 divisors."""
    cands = [B]
    cands += [d for d in range(B - 1, 0, -1) if B % d == 0 and d % 8 == 0]
    return cands


def _vmem_estimate(BB, TQ, T, Dq, Pp, Dop):
    f = 4
    est = 2 * BB * T * Dq * f                        # x block (double-buffered)
    est += BB * T * 3 * Pp * f                       # cached projection scratch
    est += 2 * TQ * BB * Dop * f                     # attn out block
    est += 2 * TQ * BB * T * f                       # attn-weights out block
    est += 2 * (Dq * 3 * Pp + 3 * Pp + Pp * Dop + Dop) * f    # weights
    est += 4 * BB * TQ * T * f                       # scores / exp / probs / probs^T
    est += 2 * BB * T * Pp * f                       # k / v reads
    est += 2 * BB * TQ * Pp * f                      # q slice + context
    est += 2 * BB * TQ * Dop * f                     # pre-store output temps
    return int(est * 1.25)                           # slack


def _pick_tiles(B, T, Dq, Pp, Dop):
    """VMEM-aware (BB, TQ, vmem_limit) selection; headroom left for v7x's 64 MiB."""
    try:
        info = pltpu.get_tpu_info()
        cap = int(getattr(info, "vmem_capacity_bytes", 0)) or (64 << 20)
    except Exception:
        cap = 64 << 20
    budget = int(cap * 0.75)
    best = None
    for bb in _bb_candidates(B):
        for tq in _tq_candidates(T):
            est = _vmem_estimate(bb, tq, T, Dq, Pp, Dop)
            if est <= budget:
                return bb, tq, min(budget, max(2 * est, 32 << 20))
            if best is None or est < best[2]:
                best = (bb, tq, est)
    # Nothing fits the budget estimate: take the smallest candidate; compiler
    # may drop to single-buffering.  TODO(synk): online-softmax over a source
    # grid axis for very long T so scores never hold the full S axis.
    bb, tq, est = best
    return bb, tq, min(budget, max(2 * est, 32 << 20))


def single_head_attention(query_tbc, params, *, proj_dim, out_dim):
    """query_tbc: (tgt_len, bsz, q_in_dim) — Time x Batch x Channel."""
    T, B, Dq = query_tbc.shape
    scaling = proj_dim ** (-0.5)

    Pp = _round_up(proj_dim, 128)
    Dop = _round_up(out_dim, 128)

    def pad_cols(a, n):
        return jnp.pad(a, ((0, 0), (0, n - a.shape[1])))

    # One fused (Dq, 3*Pp) KQV weight; q-scaling folded into the Q columns;
    # lane-padded to 128 so the k/v split and output stores are tile-aligned.
    wkqv = jnp.concatenate([pad_cols(params["wq"] * scaling, Pp),
                            pad_cols(params["wk"], Pp),
                            pad_cols(params["wv"], Pp)], axis=1)    # (Dq, 3Pp)
    bkqv = jnp.concatenate([pad_cols(params["bq"] * scaling, Pp),
                            pad_cols(params["bk"], Pp),
                            pad_cols(params["bv"], Pp)], axis=1)    # (1, 3Pp)
    wo = jnp.pad(params["wo"], ((0, Pp - proj_dim), (0, Dop - out_dim)))
    bo = pad_cols(params["bo"], Dop)

    # Batch-major input (small B*T*Dq move; the big B*T^2 transpose is gone).
    x_btc = jnp.transpose(query_tbc, (1, 0, 2))                      # (B, T, Dq)

    BB, TQ, vmem_limit = _pick_tiles(B, T, Dq, Pp, Dop)
    grid = (B // BB, T // TQ)

    kernel = functools.partial(_sha_kernel, p_pad=Pp)

    out_shapes = (
        jax.ShapeDtypeStruct((T, B, Dop), query_tbc.dtype),   # attn (tgt-major)
        jax.ShapeDtypeStruct((T, B, T), jnp.float32),         # attn weights
    )

    flops = (2 * B * T * Dq * 3 * Pp          # fused projection
             + 2 * B * T * T * Pp * 2         # QK^T and P @ V
             + 2 * B * T * Pp * Dop)          # output projection
    transcendentals = B * T * T               # exp
    bytes_accessed = 4 * (B * T * Dq + B * T * Dop + B * T * T
                          + wkqv.size + bkqv.size + wo.size + bo.size)

    attn_pad, attnw = pl.pallas_call(
        kernel,
        out_shape=out_shapes,
        grid_spec=pltpu.PrefetchScalarGridSpec(
            num_scalar_prefetch=0,
            grid=grid,
            in_specs=[
                # full source sequence for this batch tile (projection input)
                pl.BlockSpec((BB, T, Dq), lambda bi, qi: (bi, 0, 0)),
                pl.BlockSpec(wkqv.shape, lambda bi, qi: (0, 0)),
                pl.BlockSpec(bkqv.shape, lambda bi, qi: (0, 0)),
                pl.BlockSpec(wo.shape, lambda bi, qi: (0, 0)),
                pl.BlockSpec(bo.shape, lambda bi, qi: (0, 0)),
            ],
            out_specs=[
                pl.BlockSpec((TQ, BB, Dop), lambda bi, qi: (qi, bi, 0)),
                pl.BlockSpec((TQ, BB, T), lambda bi, qi: (qi, bi, 0)),
            ],
            scratch_shapes=[pltpu.VMEM((BB, T, 3 * Pp), jnp.float32)],
        ),
        compiler_params=pltpu.CompilerParams(
            # batch tiles parallel (v7x dual-TC); query axis is 'arbitrary' so
            # the cached projection scratch is valid across query tiles.
            dimension_semantics=("parallel", "arbitrary"),
            vmem_limit_bytes=vmem_limit),
        cost_estimate=pl.CostEstimate(flops=flops,
                                      transcendentals=transcendentals,
                                      bytes_accessed=bytes_accessed),
    )(x_btc, wkqv, bkqv, wo, bo)

    # outputs already (tgt, bsz, ...); just strip the lane padding.
    return attn_pad[:, :, :out_dim], attnw


def _reference(query_tbc, params, *, proj_dim, out_dim):
    """Pure-JAX reference mirroring the PyTorch forward."""
    scaling = proj_dim ** (-0.5)
    x = jnp.transpose(query_tbc, (1, 0, 2))                   # (B, T, Dq)
    q = x @ params["wq"] + params["bq"]
    k = x @ params["wk"] + params["bk"]
    v = x @ params["wv"] + params["bv"]
    q = q * scaling
    scores = jnp.einsum("btd,bsd->bts", q, k)
    probs = jax.nn.softmax(scores, axis=-1)
    ctx = jnp.einsum("bts,bsd->btd", probs, v)
    out = ctx @ params["wo"] + params["bo"]
    return jnp.transpose(out, (1, 0, 2)), jnp.transpose(probs, (1, 0, 2))


if __name__ == "__main__":
    # small shapes consistent with the module's Time x Batch x Channel inputs
    tgt_len, bsz = 8, 2
    q_in_dim, proj_dim, out_dim = 32, 32, 32

    key = jax.random.PRNGKey(0)
    ks = jax.random.split(key, 8)

    # deterministic synthetic parameters (fused kqv linear stored pre-chunked)
    params = {
        "wq": jax.random.normal(ks[0], (q_in_dim, proj_dim), jnp.float32) * 0.1,
        "wk": jax.random.normal(ks[1], (q_in_dim, proj_dim), jnp.float32) * 0.1,
        "wv": jax.random.normal(ks[2], (q_in_dim, proj_dim), jnp.float32) * 0.1,
        "bq": jax.random.normal(ks[3], (1, proj_dim), jnp.float32) * 0.1,
        "bk": jax.random.normal(ks[4], (1, proj_dim), jnp.float32) * 0.1,
        "bv": jax.random.normal(ks[5], (1, proj_dim), jnp.float32) * 0.1,
        "wo": jax.random.normal(ks[6], (proj_dim, out_dim), jnp.float32) * 0.1,
        "bo": jax.random.normal(ks[7], (1, out_dim), jnp.float32) * 0.1,
    }

    query = jax.random.normal(jax.random.PRNGKey(42),
                              (tgt_len, bsz, q_in_dim), jnp.float32)

    attn, attn_w = single_head_attention(query, params,
                                         proj_dim=proj_dim, out_dim=out_dim)
    attn = jax.block_until_ready(attn)
    attn_w = jax.block_until_ready(attn_w)

    ref_attn, ref_w = _reference(query, params, proj_dim=proj_dim, out_dim=out_dim)
    assert attn.shape == (tgt_len, bsz, out_dim)
    assert attn_w.shape == (tgt_len, bsz, tgt_len)
    assert jnp.allclose(attn, ref_attn, atol=1e-5, rtol=1e-5)
    assert jnp.allclose(attn_w, ref_w, atol=1e-5, rtol=1e-5)

    # TODO(synk): key_padding_mask / attn_mask, dropout, incremental (KV-cache)
    # state, encoder-decoder branch, and theta/disentangle/qk_normalize variants
    # are not wired in.  Further opt-in wins: bf16 MXU operands / bf16 attnw
    # writeback (relaxed tolerance), Dq lane-padding, and an online-softmax
    # source-axis grid dimension for very long T.
    print("KERNEL_OK")
</pallas_src>

<mosaic_0001>
module attributes {stable_mosaic.version = 11 : i64} {
  func.func @_sha_kernel(%arg0: i32, %arg1: i32, %arg2: memref<2x8x32xf32, #tpu.memory_space<vmem>>, %arg3: memref<32x384xf32, #tpu.memory_space<vmem>>, %arg4: memref<1x384xf32, #tpu.memory_space<vmem>>, %arg5: memref<128x128xf32, #tpu.memory_space<vmem>>, %arg6: memref<1x128xf32, #tpu.memory_space<vmem>>, %arg7: memref<8x2x128xf32, #tpu.memory_space<vmem>>, %arg8: memref<8x2x8xf32, #tpu.memory_space<vmem>>, %arg9: memref<2x8x384xf32, #tpu.memory_space<vmem>>) attributes {dimension_semantics = [#tpu.dimension_semantics<parallel>, #tpu.dimension_semantics<arbitrary>], iteration_bounds = array<i64: 1, 1>, scalar_prefetch = 0 : i64, scratch_operands = 1 : i64, tpu.core_type = #tpu.core_type<tc>, window_params = [{transform_indices = @transform_0, window_bounds = array<i64: 2, 8, 32>}, {pipeline_mode = #tpu.pipeline_mode<synchronous>, transform_indices = @transform_1, window_bounds = array<i64: 32, 384>}, {pipeline_mode = #tpu.pipeline_mode<synchronous>, transform_indices = @transform_2, window_bounds = array<i64: 1, 384>}, {pipeline_mode = #tpu.pipeline_mode<synchronous>, transform_indices = @transform_3, window_bounds = array<i64: 128, 128>}, {pipeline_mode = #tpu.pipeline_mode<synchronous>, transform_indices = @transform_4, window_bounds = array<i64: 1, 128>}, {transform_indices = @transform_5, window_bounds = array<i64: 8, 2, 128>}, {transform_indices = @transform_6, window_bounds = array<i64: 8, 2, 8>}]} {
    %c0_i32 = arith.constant 0 : i32
    %0 = arith.cmpi eq, %arg1, %c0_i32 : i32
    %1 = arith.extui %0 : i1 to i32
    %c0_i32_0 = arith.constant 0 : i32
    %2 = arith.cmpi ne, %1, %c0_i32_0 : i32
    scf.if %2 {
      %c0_20 = arith.constant 0 : index
      %c0_21 = arith.constant 0 : index
      %c0_22 = arith.constant 0 : index
      %32 = vector.load %arg2[%c0_20, %c0_21, %c0_22] : memref<2x8x32xf32, #tpu.memory_space<vmem>>, vector<2x8x32xf32>
      %33 = vector.shape_cast %32 : vector<2x8x32xf32> to vector<16x32xf32>
      %c0_23 = arith.constant 0 : index
      %c0_24 = arith.constant 0 : index
      %34 = vector.load %arg3[%c0_23, %c0_24] : memref<32x384xf32, #tpu.memory_space<vmem>>, vector<32x384xf32>
      %cst_25 = arith.constant dense<0.000000e+00> : vector<16x384xf32>
      %35 = tpu.matmul %33, %34, %cst_25 {dimension_numbers = #tpu.dot_dimension_numbers<[1], [0], [0], [1], [0, 0, 1, 1], [], []>} : vector<16x32xf32>, vector<32x384xf32>, vector<16x384xf32> -> vector<16x384xf32>
      %c0_26 = arith.constant 0 : index
      %c0_27 = arith.constant 0 : index
      %36 = vector.load %arg4[%c0_26, %c0_27] : memref<1x384xf32, #tpu.memory_space<vmem>>, vector<1x384xf32>
      %37 = vector.broadcast %36 : vector<1x384xf32> to vector<16x384xf32>
      %38 = arith.addf %35, %37 : vector<16x384xf32>
      %39 = vector.shape_cast %38 : vector<16x384xf32> to vector<2x8x384xf32>
      %c0_28 = arith.constant 0 : index
      %c0_29 = arith.constant 0 : index
      %c0_30 = arith.constant 0 : index
      %40 = vector.load %arg9[%c0_28, %c0_29, %c0_30] : memref<2x8x384xf32, #tpu.memory_space<vmem>>, vector<2x8x384xf32>
      tpu.vector_store %arg9[%c0_28, %c0_29, %c0_30], %39 {strides = array<i32>} : memref<2x8x384xf32, #tpu.memory_space<vmem>>, vector<2x8x384xf32>,
    } else {
    }
    %c8_i32 = arith.constant 8 : i32
    %3 = arith.muli %arg1, %c8_i32 : i32
    %4 = tpu.assume_multiple %3, 8 : i32
    %c0 = arith.constant 0 : index
    %5 = arith.index_cast %4 : i32 to index
    %c0_1 = arith.constant 0 : index
    %6 = vector.load %arg9[%c0, %5, %c0_1] : memref<2x8x384xf32, #tpu.memory_space<vmem>>, vector<2x8x128xf32>
    %c0_2 = arith.constant 0 : index
    %c0_3 = arith.constant 0 : index
    %c128 = arith.constant 128 : index
    %7 = vector.load %arg9[%c0_2, %c0_3, %c128] : memref<2x8x384xf32, #tpu.memory_space<vmem>>, vector<2x8x128xf32>
    %c0_4 = arith.constant 0 : index
    %c0_5 = arith.constant 0 : index
    %c256 = arith.constant 256 : index
    %8 = vector.load %arg9[%c0_4, %c0_5, %c256] : memref<2x8x384xf32, #tpu.memory_space<vmem>>, vector<2x8x128xf32>
    "tpu.trace_start"() <{level = 10 : i32, message = "bqd,bkd->bqk"}> : () -> ()
    %cst = arith.constant dense<0.000000e+00> : vector<2x8x8xf32>
    %9 = tpu.matmul %6, %7, %cst {dimension_numbers = #tpu.dot_dimension_numbers<[2], [2], [1], [1], [0, 0, 0, 1, 1, 1], [0], [0]>} : vector<2x8x128xf32>, vector<2x8x128xf32>, vector<2x8x8xf32> -> vector<2x8x8xf32>
    "tpu.trace_stop"() : () -> ()
    %cst_6 = arith.constant dense<0xFF800000> : vector<2x8xf32>
    %10 = vector.multi_reduction <maximumf>, %9, %cst_6 [2] : vector<2x8x8xf32> to vector<2x8xf32>
    %11 = vector.shape_cast %10 : vector<2x8xf32> to vector<2x8x1xf32>
    %12 = vector.broadcast %11 : vector<2x8x1xf32> to vector<2x8x8xf32>
    %13 = arith.subf %9, %12 : vector<2x8x8xf32>
    %14 = math.exp %13 : vector<2x8x8xf32>
    %cst_7 = arith.constant dense<0.000000e+00> : vector<2x8xf32>
    %15 = vector.multi_reduction <add>, %14, %cst_7 [2] : vector<2x8x8xf32> to vector<2x8xf32>
    %16 = vector.shape_cast %15 : vector<2x8xf32> to vector<2x8x1xf32>
    %17 = tpu.reciprocal %16 : vector<2x8x1xf32> -> vector<2x8x1xf32>
    %18 = vector.broadcast %17 : vector<2x8x1xf32> to vector<2x8x8xf32>
    %19 = arith.mulf %14, %18 : vector<2x8x8xf32>
    %20 = tpu.transpose %19, [1, 0, 2] : vector<2x8x8xf32> -> vector<8x2x8xf32>
    %c0_8 = arith.constant 0 : index
    %c0_9 = arith.constant 0 : index
    %c0_10 = arith.constant 0 : index
    %21 = vector.load %arg8[%c0_8, %c0_9, %c0_10] : memref<8x2x8xf32, #tpu.memory_space<vmem>>, vector<8x2x8xf32>
    tpu.vector_store %arg8[%c0_8, %c0_9, %c0_10], %20 {strides = array<i32>} : memref<8x2x8xf32, #tpu.memory_space<vmem>>, vector<8x2x8xf32>,
    "tpu.trace_start"() <{level = 10 : i32, message = "bqk,bkd->bqd"}> : () -> ()
    %cst_11 = arith.constant dense<0.000000e+00> : vector<2x8x128xf32>
    %22 = tpu.matmul %19, %8, %cst_11 {dimension_numbers = #tpu.dot_dimension_numbers<[2], [1], [1], [2], [0, 0, 0, 1, 1, 2], [0], [0]>} : vector<2x8x8xf32>, vector<2x8x128xf32>, vector<2x8x128xf32> -> vector<2x8x128xf32>
    "tpu.trace_stop"() : () -> ()
    %23 = vector.shape_cast %22 : vector<2x8x128xf32> to vector<16x128xf32>
    %c0_12 = arith.constant 0 : index
    %c0_13 = arith.constant 0 : index
    %24 = vector.load %arg5[%c0_12, %c0_13] : memref<128x128xf32, #tpu.memory_space<vmem>>, vector<128x128xf32>
    %cst_14 = arith.constant dense<0.000000e+00> : vector<16x128xf32>
    %25 = tpu.matmul %23, %24, %cst_14 {dimension_numbers = #tpu.dot_dimension_numbers<[1], [0], [0], [1], [0, 0, 1, 1], [], []>} : vector<16x128xf32>, vector<128x128xf32>, vector<16x128xf32> -> vector<16x128xf32>
    %c0_15 = arith.constant 0 : index
    %c0_16 = arith.constant 0 : index
    %26 = vector.load %arg6[%c0_15, %c0_16] : memref<1x128xf32, #tpu.memory_space<vmem>>, vector<1x128xf32>
    %27 = vector.broadcast %26 : vector<1x128xf32> to vector<16x128xf32>
    %28 = arith.addf %25, %27 : vector<16x128xf32>
    %29 = vector.shape_cast %28 : vector<16x128xf32> to vector<2x8x128xf32>
    %30 = tpu.transpose %29, [1, 0, 2] : vector<2x8x128xf32> -> vector<8x2x128xf32>
    %c0_17 = arith.constant 0 : index
    %c0_18 = arith.constant 0 : index
    %c0_19 = arith.constant 0 : index
    %31 = vector.load %arg7[%c0_17, %c0_18, %c0_19] : memref<8x2x128xf32, #tpu.memory_space<vmem>>, vector<8x2x128xf32>
    tpu.vector_store %arg7[%c0_17, %c0_18, %c0_19], %30 {strides = array<i32>} : memref<8x2x128xf32, #tpu.memory_space<vmem>>, vector<8x2x128xf32>,
    return
  }
  func.func @transform_0(%arg0: i32, %arg1: i32) -> (i32, i32, i32) {
    %c0_i32 = arith.constant 0 : i32
    %c0_i32_0 = arith.constant 0 : i32
    %c0_i32_1 = arith.constant 0 : i32
    return %arg0, %c0_i32, %c0_i32_0 : i32, i32, i32
  }
  func.func @transform_1(%arg0: i32, %arg1: i32) -> (i32, i32) {
    %c0_i32 = arith.constant 0 : i32
    %c0_i32_0 = arith.constant 0 : i32
    %c0_i32_1 = arith.constant 0 : i32
    return %c0_i32, %c0_i32_0 : i32, i32
  }
  func.func @transform_2(%arg0: i32, %arg1: i32) -> (i32, i32) {
    %c0_i32 = arith.constant 0 : i32
    %c0_i32_0 = arith.constant 0 : i32
    %c0_i32_1 = arith.constant 0 : i32
    return %c0_i32, %c0_i32_0 : i32, i32
  }
  func.func @transform_3(%arg0: i32, %arg1: i32) -> (i32, i32) {
    %c0_i32 = arith.constant 0 : i32
    %c0_i32_0 = arith.constant 0 : i32
    %c0_i32_1 = arith.constant 0 : i32
    return %c0_i32, %c0_i32_0 : i32, i32
  }
  func.func @transform_4(%arg0: i32, %arg1: i32) -> (i32, i32) {
    %c0_i32 = arith.constant 0 : i32
    %c0_i32_0 = arith.constant 0 : i32
    %c0_i32_1 = arith.constant 0 : i32
    return %c0_i32, %c0_i32_0 : i32, i32
  }
  func.func @transform_5(%arg0: i32, %arg1: i32) -> (i32, i32, i32) {
    %c0_i32 = arith.constant 0 : i32
    %c0_i32_0 = arith.constant 0 : i32
    return %arg1, %arg0, %c0_i32 : i32, i32, i32
  }
  func.func @transform_6(%arg0: i32, %arg1: i32) -> (i32, i32, i32) {
    %c0_i32 = arith.constant 0 : i32
    %c0_i32_0 = arith.constant 0 : i32
    return %arg1, %arg0, %c0_i32 : i32, i32, i32
  }
}

</mosaic_0001>

<llo_original>
// kernel: tpu_custom_call.1
$region0: #{tpu_custom_call.1}
  #allocation0 [shape = 'u32[]', space=smem, size = 0x4, offset = 0x4, fixed_abs, tag = 'smem constant byte address 0x4 - core index']
  #allocation1 [shape = 'u32[144,128]{1,0:T(1,128)}', space=vmem, size = 0x12000, scoped, tag = 'internal scratch']
  #allocation2 [shape = 'f32[2,8,384]{2,1,0:T(8,128)}', space=vmem, size = 0x6000, scoped, tag = 'scratch operand']
  %s0 = inlined_call_operand.hbm [shape: f32[2,8,32], index: 0, kind: input, shape index: {}]
  %s1 = inlined_call_operand.hbm [shape: f32[32,384], index: 1, kind: input, shape index: {}]
  %s2 = inlined_call_operand.vmem [shape: f32[1,384], index: 2, kind: input, shape index: {}]
  %s3 = inlined_call_operand.hbm [shape: f32[128,128], index: 3, kind: input, shape index: {}]
  %s4 = inlined_call_operand.vmem [shape: f32[1,128], index: 4, kind: input, shape index: {}]
  %s5 = inlined_call_operand.hbm [shape: f32[8,2,128], index: 5, kind: output, shape index: {0}]
  %s6 = inlined_call_operand.hbm [shape: f32[8,2,8], index: 6, kind: output, shape index: {1}]
  %7 = xla_tuple %s5, %s6
  %s8 = sld [smem:[#allocation0]]
  $region54: #{tpu_custom_call.1} parent=0
    _
  %s10 = ssub.s32 1, %s8
  %s11 = scalar_select 0, %s10, %s8
  $region1: #{tpu_custom_call.1} parent=0
    #allocation3 [shape = 'u8[8192]{0}', space=vmem, size = 0x2000, scoped, tag = 'input window, operand 0, single buffered']
    #allocation4 [shape = 's32[1]{0}', space=sflag, size = 0x4, scoped, tag = 'scoped memory for tpu_custom_call.1']
    #allocation5 [shape = 's32[1]{0}', space=sflag, size = 0x4, scoped, tag = 'scoped memory for tpu_custom_call.1']
    #allocation6 [shape = 'u8[49152]{0}', space=vmem, size = 0xc000, scoped, tag = 'input window, operand 1, single buffered']
    #allocation7 [shape = 's32[1]{0}', space=sflag, size = 0x4, scoped, tag = 'scoped memory for tpu_custom_call.1']
    #allocation8 [shape = 'u8[65536]{0}', space=vmem, size = 0x10000, scoped, tag = 'input window, operand 3, single buffered']
    #allocation9 [shape = 'u8[8192]{0}', space=vmem, size = 0x2000, scoped, tag = 'output window, operand 0, single buffered']
    #allocation10 [shape = 'u8[8192]{0}', space=vmem, size = 0x2000, scoped, tag = 'output window, operand 1, single buffered']
    #allocation11 [shape = 's32[1]{0}', space=sflag, size = 0x4, scoped, tag = 'scoped memory for tpu_custom_call.1']
    %12 = vsyncpa [#allocation4], 0
    %13 = vsyncpa [#allocation7], 0
    %14 = vsyncpa [#allocation5], 0
    %15 = vsyncpa [#allocation11], 0
    // Predicated region
    $region2: #{tpu_custom_call.1} parent=1 // pred_check
      _
    $region3: #{tpu_custom_call.1} parent=1 // pred_check_branch
      %17 = sbr.rel (0) target = $region5
    $region4: #{tpu_custom_call.1} parent=1 // pred_region
      %s19 = ssub.s32 256, 256
      %20 = vsyncadd [#allocation4], %s19
      %s21 = sshll.u32 [#allocation3], 4
      %s22 = int_to_ptr.vmem [resolvable:$true] %s21
      %27 = dma.hbm_to_vmem [thread:$0]  %s0, 256, %s22, [#allocation4], 128, 128, 8
    $region5: #{tpu_custom_call.1} parent=1 // pred_fallthru
      _
    // Predicated region
    $region6: #{tpu_custom_call.1} parent=1 // pred_check
      _
    $region7: #{tpu_custom_call.1} parent=1 // pred_check_branch
      %29 = sbr.rel (0) target = $region9
    $region8: #{tpu_custom_call.1} parent=1 // pred_region
      %s31 = ssub.s32 1536, 1536
      %32 = vsyncadd [#allocation7], %s31
      %s33 = sshll.u32 [#allocation6], 4
      %s34 = int_to_ptr.vmem [resolvable:$true] %s33
      %39 = dma.hbm_to_vmem [thread:$0]  %s1, 1536, %s34, [#allocation7], 384, 384, 24
    $region9: #{tpu_custom_call.1} parent=1 // pred_fallthru
      _
    // Predicated region
    $region10: #{tpu_custom_call.1} parent=1 // pred_check
      _
    $region11: #{tpu_custom_call.1} parent=1 // pred_check_branch
      %41 = sbr.rel (0) target = $region13
    $region12: #{tpu_custom_call.1} parent=1 // pred_region
      _
    $region13: #{tpu_custom_call.1} parent=1 // pred_fallthru
      _
    // Predicated region
    $region14: #{tpu_custom_call.1} parent=1 // pred_check
      _
    $region15: #{tpu_custom_call.1} parent=1 // pred_check_branch
      %43 = sbr.rel (0) target = $region17
    $region16: #{tpu_custom_call.1} parent=1 // pred_region
      %s45 = ssub.s32 2048, 2048
      %46 = vsyncadd [#allocation7], %s45
      %s47 = sshll.u32 [#allocation8], 4
      %s48 = int_to_ptr.vmem [resolvable:$true] %s47
      %53 = dma.hbm_to_vmem [thread:$0]  %s3, 2048, %s48, [#allocation7], 128, 128, 8
    $region17: #{tpu_custom_call.1} parent=1 // pred_fallthru
      _
    // Predicated region
    $region18: #{tpu_custom_call.1} parent=1 // pred_check
      _
    $region19: #{tpu_custom_call.1} parent=1 // pred_check_branch
      %55 = sbr.rel (0) target = $region21
    $region20: #{tpu_custom_call.1} parent=1 // pred_region
      _
    $region21: #{tpu_custom_call.1} parent=1 // pred_fallthru
      _
    // Predicated region
    $region22: #{tpu_custom_call.1} parent=1 // pred_check
      _
    $region23: #{tpu_custom_call.1} parent=1 // pred_check_branch
      %57 = sbr.rel (0) target = $region25
    $region24: #{tpu_custom_call.1} parent=1 // pred_region
      %58 = dma.done [#allocation4], 256
    $region25: #{tpu_custom_call.1} parent=1 // pred_fallthru
      _
    // Predicated region
    $region26: #{tpu_custom_call.1} parent=1 // pred_check
      _
    $region27: #{tpu_custom_call.1} parent=1 // pred_check_branch
      %60 = sbr.rel (0) target = $region29
    $region28: #{tpu_custom_call.1} parent=1 // pred_region
      %61 = dma.done [#allocation7], 1536
    $region29: #{tpu_custom_call.1} parent=1 // pred_fallthru
      _
    // Predicated region
    $region30: #{tpu_custom_call.1} parent=1 // pred_check
      _
    $region31: #{tpu_custom_call.1} parent=1 // pred_check_branch
      %63 = sbr.rel (0) target = $region33
    $region32: #{tpu_custom_call.1} parent=1 // pred_region
      %64 = dma.done [#allocation7], 2048
    $region33: #{tpu_custom_call.1} parent=1 // pred_fallthru
      _
    %p65 = scmp.eq.s32.totalorder 0, 0
    // Predicated region
    $region34: #{tpu_custom_call.1} parent=1 // pred_check
      %p66 = pneg %p65
    $region35: #{tpu_custom_call.1} parent=1 // pred_check_branch
      %68 = sbr.rel (%p66) target = $region37
    $region36: #{tpu_custom_call.1} parent=1 // pred_region
      %v69 = vld [vmem:[#allocation3] sm:$0xff]
      %v70 = vld [vmem:[#allocation3 + $0x8] sm:$0xff]
      %v71 = vld [vmem:[#allocation6] sm:$0xff]
      %v72 = vld [vmem:[#allocation6 + $0x8] sm:$0xff]
      %v73 = vld [vmem:[#allocation6 + $0x10] sm:$0xff]
      %v74 = vld [vmem:[#allocation6 + $0x18] sm:$0xff]
      %v75 = vld [vmem:[#allocation6 + $0x20] sm:$0xff]
      %v76 = vld [vmem:[#allocation6 + $0x28] sm:$0xff]
      %v77 = vld [vmem:[#allocation6 + $0x30] sm:$0xff]
      %v78 = vld [vmem:[#allocation6 + $0x38] sm:$0xff]
      %v79 = vld [vmem:[#allocation6 + $0x40] sm:$0xff]
      %v80 = vld [vmem:[#allocation6 + $0x48] sm:$0xff]
      %v81 = vld [vmem:[#allocation6 + $0x50] sm:$0xff]
      %v82 = vld [vmem:[#allocation6 + $0x58] sm:$0xff]
      %v83 = vld [vmem:[%s2] sm:$0x7]
      %v85 = vlaneseq
      %v86 = vshrl.u32 %v85, 7
      %v87 = vsub.s32 0, %v86
      %v88 = vrot.slane %v83, %v87
      %v89 = vlaneseq
      %v90 = vshrl.u32 %v89, 7
      %v91 = vsub.s32 1, %v90
      %v92 = vrot.slane %v83, %v91
      %v93 = vlaneseq
      %v94 = vshrl.u32 %v93, 7
      %v95 = vsub.s32 2, %v94
      %v96 = vrot.slane %v83, %v95
      %vm100 = vcmask 261120
      %v102 = vsel %vm100, %v69, 0
      %v105 = vsel %vm100, %v70, 0
      %107 = vmatprep.subr.mxu0 %v72
      %108 = vmatpush1.msra.mxu0 %v71
      %109 = vmatprep.subr.mxu0 %v75
      %110 = vmatpush1.msra.mxu0 %v74
      %111 = vmatprep.subr.mxu0 %v78
      %112 = vmatpush1.msra.mxu0 %v77
      %113 = vmatprep.subr.mxu0 %v81
      %114 = vmatpush1.msra.mxu0 %v80
      %115 = vmatprep.subr.mxu0 0.0
      %116 = vmatpush1.msra.mxu0 0.0
      %117 = vmatprep.subr.mxu0 0.0
      %118 = vmatpush1.msra.mxu0 0.0
      %119 = vmatprep.subr.mxu0 0.0
      %120 = vmatpush1.msra.mxu0 0.0
      %121 = vmatprep.subr.mxu0 0.0
      %122 = vmatpush1.msra.mxu0 0.0
      %123 = vmatprep.subr.mxu0 0.0
      %124 = vmatpush1.msra.mxu0 0.0
      %125 = vmatprep.subr.mxu0 0.0
      %126 = vmatpush1.msra.mxu0 0.0
      %127 = vmatprep.subr.mxu0 0.0
      %128 = vmatpush1.msra.mxu0 0.0
      %129 = vmatprep.subr.mxu0 0.0
      %130 = vmatpush1.msra.mxu0 0.0
      %131 = vmatprep.subr.mxu0 0.0
      %132 = vmatpush1.msra.mxu0 0.0
      %133 = vmatprep.subr.mxu0 0.0
      %134 = vmatpush1.msra.mxu0 0.0
      %135 = vmatprep.subr.mxu0 0.0
      %136 = vmatpush1.msra.mxu0 0.0
      %137 = vmatprep.subr.mxu0 0.0
      %138 = vmatpush1.msra.mxu0 0.0
      %139 = vmatprep.subr.mxu0 0.0
      %140 = vmatpush1.msra.mxu0 0.0
      %141 = vmatprep.subr.mxu0 0.0
      %142 = vmatpush1.msra.mxu0 0.0
      %143 = vmatprep.subr.mxu0 0.0
      %144 = vmatpush1.msra.mxu0 0.0
      %145 = vmatprep.subr.mxu0 0.0
      %146 = vmatpush1.msra.mxu0 0.0
      %147 = vmatprep.subr.mxu0 0.0
      %148 = vmatpush1.msra.mxu0 0.0
      %149 = vmatprep.subr.mxu0 0.0
      %150 = vmatpush1.msra.mxu0 0.0
      %151 = vmatprep.subr.mxu0 0.0
      %152 = vmatpush1.msra.mxu0 0.0
      %153 = vmatprep.subr.mxu0 0.0
      %154 = vmatpush1.msra.mxu0 0.0
      %155 = vmatprep.subr.mxu0 0.0
      %156 = vmatpush1.msra.mxu0 0.0
      %157 = vmatprep.subr.mxu0 0.0
      %158 = vmatpush1.msra.mxu0 0.0
      %159 = vmatprep.subr.mxu0 0.0
      %160 = vmatpush1.msra.mxu0 0.0
      %161 = vmatprep.subr.mxu0 0.0
      %162 = vmatpush1.msra.mxu0 0.0
      %163 = vmatprep.subr.mxu0 0.0
      %164 = vmatpush1.msra.mxu0 0.0
      %165 = vmatprep.subr.mxu0 0.0
      %166 = vmatpush1.msra.mxu0 0.0
      %167 = vmatprep.subr.mxu0 0.0
      %168 = vmatpush1.msra.mxu0 0.0
      %169 = vmatprep.subr.mxu0 0.0
      %170 = vmatpush1.msra.mxu0 0.0
      %171 = vmatprep.mubr.f32.mxu0 0.0
      %172 = vmatmul.mubr.f32.gmra.mrb[0].mxu0 %v102
      %v173 = vpop.f32.mrb[0].mxu0
      %v174 = vadd.f32 %v88, %v173
      %v175 = vpop.f32.mrb[0].mxu0
      %v176 = vadd.f32 %v92, %v175
      %177 = vmatprep.mubr.f32.mxu0 0.0
      %178 = vmatmul.mubr.f32.gmra.mrb[0].mxu0 %v105
      %v179 = vpop.f32.mrb[0].mxu0
      %v180 = vadd.f32 %v88, %v179
      %v181 = vpop.f32.mrb[0].mxu0
      %v182 = vadd.f32 %v92, %v181
      %183 = vdwg.mxu0
      %184 = vmatprep.subr.mxu0 0.0
      %185 = vmatpush1.msra.mxu0 %v73
      %186 = vmatprep.subr.mxu0 0.0
      %187 = vmatpush1.msra.mxu0 %v76
      %188 = vmatprep.subr.mxu0 0.0
      %189 = vmatpush1.msra.mxu0 %v79
      %190 = vmatprep.subr.mxu0 0.0
      %191 = vmatpush1.msra.mxu0 %v82
      %192 = vmatprep.subr.mxu0 0.0
      %193 = vmatpush1.msra.mxu0 0.0
      %194 = vmatprep.subr.mxu0 0.0
      %195 = vmatpush1.msra.mxu0 0.0
      %196 = vmatprep.subr.mxu0 0.0
      %197 = vmatpush1.msra.mxu0 0.0
      %198 = vmatprep.subr.mxu0 0.0
      %199 = vmatpush1.msra.mxu0 0.0
      %200 = vmatprep.subr.mxu0 0.0
      %201 = vmatpush1.msra.mxu0 0.0
      %202 = vmatprep.subr.mxu0 0.0
      %203 = vmatpush1.msra.mxu0 0.0
      %204 = vmatprep.subr.mxu0 0.0
      %205 = vmatpush1.msra.mxu0 0.0
      %206 = vmatprep.subr.mxu0 0.0
      %207 = vmatpush1.msra.mxu0 0.0
      %208 = vmatprep.subr.mxu0 0.0
      %209 = vmatpush1.msra.mxu0 0.0
      %210 = vmatprep.subr.mxu0 0.0
      %211 = vmatpush1.msra.mxu0 0.0
      %212 = vmatprep.subr.mxu0 0.0
      %213 = vmatpush1.msra.mxu0 0.0
      %214 = vmatprep.subr.mxu0 0.0
      %215 = vmatpush1.msra.mxu0 0.0
      %216 = vmatprep.subr.mxu0 0.0
      %217 = vmatpush1.msra.mxu0 0.0
      %218 = vmatprep.subr.mxu0 0.0
      %219 = vmatpush1.msra.mxu0 0.0
      %220 = vmatprep.subr.mxu0 0.0
      %221 = vmatpush1.msra.mxu0 0.0
      %222 = vmatprep.subr.mxu0 0.0
      %223 = vmatpush1.msra.mxu0 0.0
      %224 = vmatprep.subr.mxu0 0.0
      %225 = vmatpush1.msra.mxu0 0.0
      %226 = vmatprep.subr.mxu0 0.0
      %227 = vmatpush1.msra.mxu0 0.0
      %228 = vmatprep.subr.mxu0 0.0
      %229 = vmatpush1.msra.mxu0 0.0
      %230 = vmatprep.subr.mxu0 0.0
      %231 = vmatpush1.msra.mxu0 0.0
      %232 = vmatprep.subr.mxu0 0.0
      %233 = vmatpush1.msra.mxu0 0.0
      %234 = vmatprep.subr.mxu0 0.0
      %235 = vmatpush1.msra.mxu0 0.0
      %236 = vmatprep.subr.mxu0 0.0
      %237 = vmatpush1.msra.mxu0 0.0
      %238 = vmatprep.subr.mxu0 0.0
      %239 = vmatpush1.msra.mxu0 0.0
      %240 = vmatprep.subr.mxu0 0.0
      %241 = vmatpush1.msra.mxu0 0.0
      %242 = vmatprep.subr.mxu0 0.0
      %243 = vmatpush1.msra.mxu0 0.0
      %244 = vmatprep.subr.mxu0 0.0
      %245 = vmatpush1.msra.mxu0 0.0
      %246 = vmatprep.subr.mxu0 0.0
      %247 = vmatpush1.msra.mxu0 0.0
      %248 = vmatprep.mubr.f32.mxu0 0.0
      %249 = vmatmul.mubr.f32.gmra.mrb[0].mxu0 %v102
      %v250 = vpop.f32.mrb[0].mxu0
      %v251 = vadd.f32 %v96, %v250
      %v252 = vpop.f32.mrb[0].mxu0
      %253 = vmatprep.mubr.f32.mxu0 0.0
      %254 = vmatmul.mubr.f32.gmra.mrb[0].mxu0 %v105
      %v255 = vpop.f32.mrb[0].mxu0
      %v256 = vadd.f32 %v96, %v255
      %v257 = vpop.f32.mrb[0].mxu0
      %258 = vdwg.mxu0
      %259 = vst [vmem:[#allocation2] sm:$0xff] %v174
      %260 = vst [vmem:[#allocation2 + $0x8] sm:$0xff] %v176
      %261 = vst [vmem:[#allocation2 + $0x10] sm:$0xff] %v251
      %262 = vst [vmem:[#allocation2 + $0x18] sm:$0xff] %v180
      %263 = vst [vmem:[#allocation2 + $0x20] sm:$0xff] %v182
      %264 = vst [vmem:[#allocation2 + $0x28] sm:$0xff] %v256
    $region37: #{tpu_custom_call.1} parent=1 // pred_fallthru
      _
    %s265 = smul.u32 0, 8
    %s266 = sshra.s32 %s265, 3
    %s267 = sand.u32 %s265, 7
    %s268 = smul.u32 %s266, 3
    %s269 = smul.addr %s268, 8
    %s270 = scalar_lea.vmem [#allocation2], %s269
    %v271 = vld [vmem:[%s270] sm:$0xff]
    %v272 = vld [vmem:[%s270 + $0x18] sm:$0xff]
    %v273 = vld [vmem:[#allocation2 + $0x8] sm:$0xff]
    %v274 = vld [vmem:[#allocation2 + $0x20] sm:$0xff]
    %v275 = vld [vmem:[#allocation2 + $0x10] sm:$0xff]
    %v276 = vld [vmem:[#allocation2 + $0x28] sm:$0xff]
    %277 = vmatprep.subr.mxu0 0.0
    %278 = vmatpush1.xpose.msra.mxu0 %v273
    %279 = vmatprep.subr.mxu0 0.0
    %280 = vmatpush1.xpose.msra.mxu0 0.0
    %281 = vmatprep.subr.mxu0 0.0
    %282 = vmatpush1.xpose.msra.mxu0 0.0
    %283 = vmatprep.subr.mxu0 0.0
    %284 = vmatpush1.xpose.msra.mxu0 0.0
    %285 = vmatprep.subr.mxu0 0.0
    %286 = vmatpush1.xpose.msra.mxu0 0.0
    %287 = vmatprep.subr.mxu0 0.0
    %288 = vmatpush1.xpose.msra.mxu0 0.0
    %289 = vmatprep.subr.mxu0 0.0
    %290 = vmatpush1.xpose.msra.mxu0 0.0
    %291 = vmatprep.subr.mxu0 0.0
    %292 = vmatpush1.xpose.msra.mxu0 0.0
    %293 = vmatprep.subr.mxu0 0.0
    %294 = vmatpush1.xpose.msra.mxu0 0.0
    %295 = vmatprep.subr.mxu0 0.0
    %296 = vmatpush1.xpose.msra.mxu0 0.0
    %297 = vmatprep.subr.mxu0 0.0
    %298 = vmatpush1.xpose.msra.mxu0 0.0
    %299 = vmatprep.subr.mxu0 0.0
    %300 = vmatpush1.xpose.msra.mxu0 0.0
    %301 = vmatprep.subr.mxu0 0.0
    %302 = vmatpush1.xpose.msra.mxu0 0.0
    %303 = vmatprep.subr.mxu0 0.0
    %304 = vmatpush1.xpose.msra.mxu0 0.0
    %305 = vmatprep.subr.mxu0 0.0
    %306 = vmatpush1.xpose.msra.mxu0 0.0
    %307 = vmatprep.subr.mxu0 0.0
    %308 = vmatpush1.xpose.msra.mxu0 0.0
    %309 = vmatprep.subr.mxu0 0.0
    %310 = vmatpush1.xpose.msra.mxu0 0.0
    %311 = vmatprep.subr.mxu0 0.0
    %312 = vmatpush1.xpose.msra.mxu0 0.0
    %313 = vmatprep.subr.mxu0 0.0
    %314 = vmatpush1.xpose.msra.mxu0 0.0
    %315 = vmatprep.subr.mxu0 0.0
    %316 = vmatpush1.xpose.msra.mxu0 0.0
    %317 = vmatprep.subr.mxu0 0.0
    %318 = vmatpush1.xpose.msra.mxu0 0.0
    %319 = vmatprep.subr.mxu0 0.0
    %320 = vmatpush1.xpose.msra.mxu0 0.0
    %321 = vmatprep.subr.mxu0 0.0
    %322 = vmatpush1.xpose.msra.mxu0 0.0
    %323 = vmatprep.subr.mxu0 0.0
    %324 = vmatpush1.xpose.msra.mxu0 0.0
    %325 = vmatprep.subr.mxu0 0.0
    %326 = vmatpush1.xpose.msra.mxu0 0.0
    %327 = vmatprep.subr.mxu0 0.0
    %328 = vmatpush1.xpose.msra.mxu0 0.0
    %329 = vmatprep.subr.mxu0 0.0
    %330 = vmatpush1.xpose.msra.mxu0 0.0
    %331 = vmatprep.subr.mxu0 0.0
    %332 = vmatpush1.xpose.msra.mxu0 0.0
    %333 = vmatprep.subr.mxu0 0.0
    %334 = vmatpush1.xpose.msra.mxu0 0.0
    %335 = vmatprep.subr.mxu0 0.0
    %336 = vmatpush1.xpose.msra.mxu0 0.0
    %337 = vmatprep.subr.mxu0 0.0
    %338 = vmatpush1.xpose.msra.mxu0 0.0
    %339 = vmatprep.subr.mxu0 0.0
    %340 = vmatpush1.xpose.msra.mxu0 0.0
    %341 = vmatprep.mubr.f32.mxu0 0.0
    %342 = vmatmul.mubr.f32.gmra.mrb[0].mxu0 %v271
    %v343 = vpop.f32.mrb[0].mxu0
    %v344 = vadd.f32 0.0, %v343
    %v345 = vpop.f32.mrb[0].mxu0
    %346 = vdwg.mxu0
    %347 = vmatprep.subr.mxu0 0.0
    %348 = vmatpush1.xpose.msra.mxu0 %v274
    %349 = vmatprep.subr.mxu0 0.0
    %350 = vmatpush1.xpose.msra.mxu0 0.0
    %351 = vmatprep.subr.mxu0 0.0
    %352 = vmatpush1.xpose.msra.mxu0 0.0
    %353 = vmatprep.subr.mxu0 0.0
    %354 = vmatpush1.xpose.msra.mxu0 0.0
    %355 = vmatprep.subr.mxu0 0.0
    %356 = vmatpush1.xpose.msra.mxu0 0.0
    %357 = vmatprep.subr.mxu0 0.0
    %358 = vmatpush1.xpose.msra.mxu0 0.0
    %359 = vmatprep.subr.mxu0 0.0
    %360 = vmatpush1.xpose.msra.mxu0 0.0
    %361 = vmatprep.subr.mxu0 0.0
    %362 = vmatpush1.xpose.msra.mxu0 0.0
    %363 = vmatprep.subr.mxu0 0.0
    %364 = vmatpush1.xpose.msra.mxu0 0.0
    %365 = vmatprep.subr.mxu0 0.0
    %366 = vmatpush1.xpose.msra.mxu0 0.0
    %367 = vmatprep.subr.mxu0 0.0
    %368 = vmatpush1.xpose.msra.mxu0 0.0
    %369 = vmatprep.subr.mxu0 0.0
    %370 = vmatpush1.xpose.msra.mxu0 0.0
    %371 = vmatprep.subr.mxu0 0.0
    %372 = vmatpush1.xpose.msra.mxu0 0.0
    %373 = vmatprep.subr.mxu0 0.0
    %374 = vmatpush1.xpose.msra.mxu0 0.0
    %375 = vmatprep.subr.mxu0 0.0
    %376 = vmatpush1.xpose.msra.mxu0 0.0
    %377 = vmatprep.subr.mxu0 0.0
    %378 = vmatpush1.xpose.msra.mxu0 0.0
    %379 = vmatprep.subr.mxu0 0.0
    %380 = vmatpush1.xpose.msra.mxu0 0.0
    %381 = vmatprep.subr.mxu0 0.0
    %382 = vmatpush1.xpose.msra.mxu0 0.0
    %383 = vmatprep.subr.mxu0 0.0
    %384 = vmatpush1.xpose.msra.mxu0 0.0
    %385 = vmatprep.subr.mxu0 0.0
    %386 = vmatpush1.xpose.msra.mxu0 0.0
    %387 = vmatprep.subr.mxu0 0.0
    %388 = vmatpush1.xpose.msra.mxu0 0.0
    %389 = vmatprep.subr.mxu0 0.0
    %390 = vmatpush1.xpose.msra.mxu0 0.0
    %391 = vmatprep.subr.mxu0 0.0
    %392 = vmatpush1.xpose.msra.mxu0 0.0
    %393 = vmatprep.subr.mxu0 0.0
    %394 = vmatpush1.xpose.msra.mxu0 0.0
    %395 = vmatprep.subr.mxu0 0.0
    %396 = vmatpush1.xpose.msra.mxu0 0.0
    %397 = vmatprep.subr.mxu0 0.0
    %398 = vmatpush1.xpose.msra.mxu0 0.0
    %399 = vmatprep.subr.mxu0 0.0
    %400 = vmatpush1.xpose.msra.mxu0 0.0
    %401 = vmatprep.subr.mxu0 0.0
    %402 = vmatpush1.xpose.msra.mxu0 0.0
    %403 = vmatprep.subr.mxu0 0.0
    %404 = vmatpush1.xpose.msra.mxu0 0.0
    %405 = vmatprep.subr.mxu0 0.0
    %406 = vmatpush1.xpose.msra.mxu0 0.0
    %407 = vmatprep.subr.mxu0 0.0
    %408 = vmatpush1.xpose.msra.mxu0 0.0
    %409 = vmatprep.subr.mxu0 0.0
    %410 = vmatpush1.xpose.msra.mxu0 0.0
    %411 = vmatprep.mubr.f32.mxu0 0.0
    %412 = vmatmul.mubr.f32.gmra.mrb[0].mxu0 %v272
    %v413 = vpop.f32.mrb[0].mxu0
    %v414 = vadd.f32 0.0, %v413
    %v415 = vpop.f32.mrb[0].mxu0
    %416 = vdwg.mxu0
    %vm417 = vcmask 64512
    %v418 = vsel %vm417, %v344, -inf
    %419 = vmax.xlane.f32.xlu0 %v418
    %v420 = vpop.xlane.xlu0 %419
    %v421 = vsel %vm417, %v414, -inf
    %422 = vmax.xlane.f32.xlu0 %v421
    %v423 = vpop.xlane.xlu0 %422
    %v424 = vsub.f32 %v344, %v420
    %v425 = vsub.f32 %v414, %v423
    %v426 = vmul.f32 %v424, 1.442695
    %v427 = vpow.pop %v426
    %v428 = vmul.f32 %v425, 1.442695
    %v429 = vpow.pop %v428
    %v430 = vsel %vm417, %v427, 0.0
    %431 = vadd.xlane.f32.xlu0 %v430
    %v432 = vpop.xlane.xlu0 %431
    %v433 = vsel %vm417, %v429, 0.0
    %434 = vadd.xlane.f32.xlu0 %v433
    %v435 = vpop.xlane.xlu0 %434
    %v436 = vrcp.pop %v432
    %v437 = vrcp.pop %v435
    %v438 = vmul.f32 %v427, %v436
    %v439 = vmul.f32 %v429, %v437
    %v440 = vcombine.high %v438, 0.0
    %v442 = vunpack.c.l.s4 1983009808
    %v443 = vunpack.c.0.s8 %v442
    %v444 = vlaneseq
    %v445 = vshrl.u32 %v444, 7
    %v446 = vsub.s32 %v443, %v445
    %v447 = vrot.slane %v438, %v446
    %v449 = vunpack.c.l.s4 1983009808
    %v450 = vunpack.c.0.s8 %v449
    %v451 = vlaneseq
    %v452 = vshrl.u32 %v451, 7
    %v453 = vsub.s32 %v450, %v452
    %v454 = vrot.slane %v440, %v453
    %v455 = vcombine.high %v439, 0.0
    %v457 = vunpack.c.l.s4 1983009808
    %v458 = vunpack.c.0.s8 %v457
    %v459 = vlaneseq
    %v460 = vshrl.u32 %v459, 7
    %v461 = vsub.s32 %v458, %v460
    %v462 = vrot.slane %v439, %v461
    %v464 = vunpack.c.l.s4 1983009808
    %v465 = vunpack.c.0.s8 %v464
    %v466 = vlaneseq
    %v467 = vshrl.u32 %v466, 7
    %v468 = vsub.s32 %v465, %v467
    %v469 = vrot.slane %v455, %v468
    %v470 = vcombine.low %v447, %v462
    %v471 = vcombine.high %v447, %v462
    %v473 = vunpack.c.l.s4 1934713408
    %v474 = vunpack.c.0.s8 %v473
    %v475 = vlaneseq
    %v476 = vshrl.u32 %v475, 7
    %v477 = vsub.s32 %v474, %v476
    %v478 = vrot.slane %v470, %v477
    %v480 = vunpack.c.l.s4 1934713408
    %v481 = vunpack.c.0.s8 %v480
    %v482 = vlaneseq
    %v483 = vshrl.u32 %v482, 7
    %v484 = vsub.s32 %v481, %v483
    %v485 = vrot.slane %v471, %v484
    %v486 = vcombine.low %v454, %v469
    %v487 = vcombine.high %v454, %v469
    %v489 = vunpack.c.l.s4 1934713408
    %v490 = vunpack.c.0.s8 %v489
    %v491 = vlaneseq
    %v492 = vshrl.u32 %v491, 7
    %v493 = vsub.s32 %v490, %v492
    %v494 = vrot.slane %v486, %v493
    %v496 = vunpack.c.l.s4 1934713408
    %v497 = vunpack.c.0.s8 %v496
    %v498 = vlaneseq
    %v499 = vshrl.u32 %v498, 7
    %v500 = vsub.s32 %v497, %v499
    %v501 = vrot.slane %v487, %v500
    %v502 = vcombine.high %v478, 0.0
    %v503 = vcombine.high %v485, 0.0
    %v504 = vcombine.high %v494, 0.0
    %v505 = vcombine.high %v501, 0.0
    %vm506 = vcmask 58368
    %507 = vst.msk [vmem:[#allocation10] sm:$0x3] %vm506, %v478
    %508 = vst.msk [vmem:[#allocation10 + $0x2] sm:$0x3] %vm506, %v502
    %509 = vst.msk [vmem:[#allocation10 + $0x4] sm:$0x3] %vm506, %v485
    %510 = vst.msk [vmem:[#allocation10 + $0x6] sm:$0x3] %vm506, %v503
    %511 = vst.msk [vmem:[#allocation10 + $0x8] sm:$0x3] %vm506, %v494
    %512 = vst.msk [vmem:[#allocation10 + $0xa] sm:$0x3] %vm506, %v504
    %513 = vst.msk [vmem:[#allocation10 + $0xc] sm:$0x3] %vm506, %v501
    %514 = vst.msk [vmem:[#allocation10 + $0xe] sm:$0x3] %vm506, %v505
    %v516 = vsel %vm417, %v438, 0
    %518 = vmatprep.subr.mxu0 0.0
    %519 = vmatpush1.msra.mxu0 %v275
    %520 = vmatprep.subr.mxu0 0.0
    %521 = vmatpush1.msra.mxu0 0.0
    %522 = vmatprep.subr.mxu0 0.0
    %523 = vmatpush1.msra.mxu0 0.0
    %524 = vmatprep.subr.mxu0 0.0
    %525 = vmatpush1.msra.mxu0 0.0
    %526 = vmatprep.subr.mxu0 0.0
    %527 = vmatpush1.msra.mxu0 0.0
    %528 = vmatprep.subr.mxu0 0.0
    %529 = vmatpush1.msra.mxu0 0.0
    %530 = vmatprep.subr.mxu0 0.0
    %531 = vmatpush1.msra.mxu0 0.0
    %532 = vmatprep.subr.mxu0 0.0
    %533 = vmatpush1.msra.mxu0 0.0
    %534 = vmatprep.subr.mxu0 0.0
    %535 = vmatpush1.msra.mxu0 0.0
    %536 = vmatprep.subr.mxu0 0.0
    %537 = vmatpush1.msra.mxu0 0.0
    %538 = vmatprep.subr.mxu0 0.0
    %539 = vmatpush1.msra.mxu0 0.0
    %540 = vmatprep.subr.mxu0 0.0
    %541 = vmatpush1.msra.mxu0 0.0
    %542 = vmatprep.subr.mxu0 0.0
    %543 = vmatpush1.msra.mxu0 0.0
    %544 = vmatprep.subr.mxu0 0.0
    %545 = vmatpush1.msra.mxu0 0.0
    %546 = vmatprep.subr.mxu0 0.0
    %547 = vmatpush1.msra.mxu0 0.0
    %548 = vmatprep.subr.mxu0 0.0
    %549 = vmatpush1.msra.mxu0 0.0
    %550 = vmatprep.subr.mxu0 0.0
    %551 = vmatpush1.msra.mxu0 0.0
    %552 = vmatprep.subr.mxu0 0.0
    %553 = vmatpush1.msra.mxu0 0.0
    %554 = vmatprep.subr.mxu0 0.0
    %555 = vmatpush1.msra.mxu0 0.0
    %556 = vmatprep.subr.mxu0 0.0
    %557 = vmatpush1.msra.mxu0 0.0
    %558 = vmatprep.subr.mxu0 0.0
    %559 = vmatpush1.msra.mxu0 0.0
    %560 = vmatprep.subr.mxu0 0.0
    %561 = vmatpush1.msra.mxu0 0.0
    %562 = vmatprep.subr.mxu0 0.0
    %563 = vmatpush1.msra.mxu0 0.0
    %564 = vmatprep.subr.mxu0 0.0
    %565 = vmatpush1.msra.mxu0 0.0
    %566 = vmatprep.subr.mxu0 0.0
    %567 = vmatpush1.msra.mxu0 0.0
    %568 = vmatprep.subr.mxu0 0.0
    %569 = vmatpush1.msra.mxu0 0.0
    %570 = vmatprep.subr.mxu0 0.0
    %571 = vmatpush1.msra.mxu0 0.0
    %572 = vmatprep.subr.mxu0 0.0
    %573 = vmatpush1.msra.mxu0 0.0
    %574 = vmatprep.subr.mxu0 0.0
    %575 = vmatpush1.msra.mxu0 0.0
    %576 = vmatprep.subr.mxu0 0.0
    %577 = vmatpush1.msra.mxu0 0.0
    %578 = vmatprep.subr.mxu0 0.0
    %579 = vmatpush1.msra.mxu0 0.0
    %580 = vmatprep.subr.mxu0 0.0
    %581 = vmatpush1.msra.mxu0 0.0
    %582 = vmatprep.mubr.f32.mxu0 0.0
    %583 = vmatmul.mubr.f32.gmra.mrb[0].mxu0 %v516
    %v584 = vpop.f32.mrb[0].mxu0
    %v585 = vadd.f32 0.0, %v584
    %v586 = vpop.f32.mrb[0].mxu0
    %587 = vdwg.mxu0
    %v589 = vsel %vm417, %v439, 0
    %591 = vmatprep.subr.mxu0 0.0
    %592 = vmatpush1.msra.mxu0 %v276
    %593 = vmatprep.subr.mxu0 0.0
    %594 = vmatpush1.msra.mxu0 0.0
    %595 = vmatprep.subr.mxu0 0.0
    %596 = vmatpush1.msra.mxu0 0.0
    %597 = vmatprep.subr.mxu0 0.0
    %598 = vmatpush1.msra.mxu0 0.0
    %599 = vmatprep.subr.mxu0 0.0
    %600 = vmatpush1.msra.mxu0 0.0
    %601 = vmatprep.subr.mxu0 0.0
    %602 = vmatpush1.msra.mxu0 0.0
    %603 = vmatprep.subr.mxu0 0.0
    %604 = vmatpush1.msra.mxu0 0.0
    %605 = vmatprep.subr.mxu0 0.0
    %606 = vmatpush1.msra.mxu0 0.0
    %607 = vmatprep.subr.mxu0 0.0
    %608 = vmatpush1.msra.mxu0 0.0
    %609 = vmatprep.subr.mxu0 0.0
    %610 = vmatpush1.msra.mxu0 0.0
    %611 = vmatprep.subr.mxu0 0.0
    %612 = vmatpush1.msra.mxu0 0.0
    %613 = vmatprep.subr.mxu0 0.0
    %614 = vmatpush1.msra.mxu0 0.0
    %615 = vmatprep.subr.mxu0 0.0
    %616 = vmatpush1.msra.mxu0 0.0
    %617 = vmatprep.subr.mxu0 0.0
    %618 = vmatpush1.msra.mxu0 0.0
    %619 = vmatprep.subr.mxu0 0.0
    %620 = vmatpush1.msra.mxu0 0.0
    %621 = vmatprep.subr.mxu0 0.0
    %622 = vmatpush1.msra.mxu0 0.0
    %623 = vmatprep.subr.mxu0 0.0
    %624 = vmatpush1.msra.mxu0 0.0
    %625 = vmatprep.subr.mxu0 0.0
    %626 = vmatpush1.msra.mxu0 0.0
    %627 = vmatprep.subr.mxu0 0.0
    %628 = vmatpush1.msra.mxu0 0.0
    %629 = vmatprep.subr.mxu0 0.0
    %630 = vmatpush1.msra.mxu0 0.0
    %631 = vmatprep.subr.mxu0 0.0
    %632 = vmatpush1.msra.mxu0 0.0
    %633 = vmatprep.subr.mxu0 0.0
    %634 = vmatpush1.msra.mxu0 0.0
    %635 = vmatprep.subr.mxu0 0.0
    %636 = vmatpush1.msra.mxu0 0.0
    %637 = vmatprep.subr.mxu0 0.0
    %638 = vmatpush1.msra.mxu0 0.0
    %639 = vmatprep.subr.mxu0 0.0
    %640 = vmatpush1.msra.mxu0 0.0
    %641 = vmatprep.subr.mxu0 0.0
    %642 = vmatpush1.msra.mxu0 0.0
    %643 = vmatprep.subr.mxu0 0.0
    %644 = vmatpush1.msra.mxu0 0.0
    %645 = vmatprep.subr.mxu0 0.0
    %646 = vmatpush1.msra.mxu0 0.0
    %647 = vmatprep.subr.mxu0 0.0
    %648 = vmatpush1.msra.mxu0 0.0
    %649 = vmatprep.subr.mxu0 0.0
    %650 = vmatpush1.msra.mxu0 0.0
    %651 = vmatprep.subr.mxu0 0.0
    %652 = vmatpush1.msra.mxu0 0.0
    %653 = vmatprep.subr.mxu0 0.0
    %654 = vmatpush1.msra.mxu0 0.0
    %655 = vmatprep.mubr.f32.mxu0 0.0
    %656 = vmatmul.mubr.f32.gmra.mrb[0].mxu0 %v589
    %v657 = vpop.f32.mrb[0].mxu0
    %v658 = vadd.f32 0.0, %v657
    %v659 = vpop.f32.mrb[0].mxu0
    %660 = vdwg.mxu0
    %v661 = vld [vmem:[#allocation8] sm:$0xff]
    %v662 = vld [vmem:[#allocation8 + $0x8] sm:$0xff]
    %v663 = vld [vmem:[#allocation8 + $0x10] sm:$0xff]
    %v664 = vld [vmem:[#allocation8 + $0x18] sm:$0xff]
    %v665 = vld [vmem:[#allocation8 + $0x20] sm:$0xff]
    %v666 = vld [vmem:[#allocation8 + $0x28] sm:$0xff]
    %v667 = vld [vmem:[#allocation8 + $0x30] sm:$0xff]
    %v668 = vld [vmem:[#allocation8 + $0x38] sm:$0xff]
    %v669 = vld [vmem:[#allocation8 + $0x40] sm:$0xff]
    %v670 = vld [vmem:[#allocation8 + $0x48] sm:$0xff]
    %v671 = vld [vmem:[#allocation8 + $0x50] sm:$0xff]
    %v672 = vld [vmem:[#allocation8 + $0x58] sm:$0xff]
    %v673 = vld [vmem:[#allocation8 + $0x60] sm:$0xff]
    %v674 = vld [vmem:[#allocation8 + $0x68] sm:$0xff]
    %v675 = vld [vmem:[#allocation8 + $0x70] sm:$0xff]
    %v676 = vld [vmem:[#allocation8 + $0x78] sm:$0xff]
    %v677 = vld [vmem:[%s4] sm:$0x1]
    %v679 = vlaneseq
    %v680 = vshrl.u32 %v679, 7
    %v681 = vsub.s32 0, %v680
    %v682 = vrot.slane %v677, %v681
    %684 = vmatprep.subr.mxu0 0.0
    %685 = vmatpush1.msra.mxu0 %v661
    %686 = vmatprep.subr.mxu0 0.0
    %687 = vmatpush1.msra.mxu0 %v662
    %688 = vmatprep.subr.mxu0 0.0
    %689 = vmatpush1.msra.mxu0 %v663
    %690 = vmatprep.subr.mxu0 0.0
    %691 = vmatpush1.msra.mxu0 %v664
    %692 = vmatprep.subr.mxu0 0.0
    %693 = vmatpush1.msra.mxu0 %v665
    %694 = vmatprep.subr.mxu0 0.0
    %695 = vmatpush1.msra.mxu0 %v666
    %696 = vmatprep.subr.mxu0 0.0
    %697 = vmatpush1.msra.mxu0 %v667
    %698 = vmatprep.subr.mxu0 0.0
    %699 = vmatpush1.msra.mxu0 %v668
    %700 = vmatprep.subr.mxu0 0.0
    %701 = vmatpush1.msra.mxu0 %v669
    %702 = vmatprep.subr.mxu0 0.0
    %703 = vmatpush1.msra.mxu0 %v670
    %704 = vmatprep.subr.mxu0 0.0
    %705 = vmatpush1.msra.mxu0 %v671
    %706 = vmatprep.subr.mxu0 0.0
    %707 = vmatpush1.msra.mxu0 %v672
    %708 = vmatprep.subr.mxu0 0.0
    %709 = vmatpush1.msra.mxu0 %v673
    %710 = vmatprep.subr.mxu0 0.0
    %711 = vmatpush1.msra.mxu0 %v674
    %712 = vmatprep.subr.mxu0 0.0
    %713 = vmatpush1.msra.mxu0 %v675
    %714 = vmatprep.subr.mxu0 0.0
    %715 = vmatpush1.msra.mxu0 %v676
    %716 = vmatprep.subr.mxu0 0.0
    %717 = vmatpush1.msra.mxu0 0.0
    %718 = vmatprep.subr.mxu0 0.0
    %719 = vmatpush1.msra.mxu0 0.0
    %720 = vmatprep.subr.mxu0 0.0
    %721 = vmatpush1.msra.mxu0 0.0
    %722 = vmatprep.subr.mxu0 0.0
    %723 = vmatpush1.msra.mxu0 0.0
    %724 = vmatprep.subr.mxu0 0.0
    %725 = vmatpush1.msra.mxu0 0.0
    %726 = vmatprep.subr.mxu0 0.0
    %727 = vmatpush1.msra.mxu0 0.0
    %728 = vmatprep.subr.mxu0 0.0
    %729 = vmatpush1.msra.mxu0 0.0
    %730 = vmatprep.subr.mxu0 0.0
    %731 = vmatpush1.msra.mxu0 0.0
    %732 = vmatprep.subr.mxu0 0.0
    %733 = vmatpush1.msra.mxu0 0.0
    %734 = vmatprep.subr.mxu0 0.0
    %735 = vmatpush1.msra.mxu0 0.0
    %736 = vmatprep.subr.mxu0 0.0
    %737 = vmatpush1.msra.mxu0 0.0
    %738 = vmatprep.subr.mxu0 0.0
    %739 = vmatpush1.msra.mxu0 0.0
    %740 = vmatprep.subr.mxu0 0.0
    %741 = vmatpush1.msra.mxu0 0.0
    %742 = vmatprep.subr.mxu0 0.0
    %743 = vmatpush1.msra.mxu0 0.0
    %744 = vmatprep.subr.mxu0 0.0
    %745 = vmatpush1.msra.mxu0 0.0
    %746 = vmatprep.subr.mxu0 0.0
    %747 = vmatpush1.msra.mxu0 0.0
    %748 = vmatprep.mubr.f32.mxu0 0.0
    %749 = vmatmul.mubr.f32.gmra.mrb[0].mxu0 %v585
    %v750 = vpop.f32.mrb[0].mxu0
    %v751 = vadd.f32 %v682, %v750
    %v752 = vpop.f32.mrb[0].mxu0
    %753 = vmatprep.mubr.f32.mxu0 0.0
    %754 = vmatmul.mubr.f32.gmra.mrb[0].mxu0 %v658
    %v755 = vpop.f32.mrb[0].mxu0
    %v756 = vadd.f32 %v682, %v755
    %v757 = vpop.f32.mrb[0].mxu0
    %758 = vdwg.mxu0
    %v759 = vcombine.high %v751, 0.0
    %v761 = vunpack.c.l.s4 1983009808
    %v762 = vunpack.c.0.s8 %v761
    %v763 = vlaneseq
    %v764 = vshrl.u32 %v763, 7
    %v765 = vsub.s32 %v762, %v764
    %v766 = vrot.slane %v751, %v765
    %v768 = vunpack.c.l.s4 1983009808
    %v769 = vunpack.c.0.s8 %v768
    %v770 = vlaneseq
    %v771 = vshrl.u32 %v770, 7
    %v772 = vsub.s32 %v769, %v771
    %v773 = vrot.slane %v759, %v772
    %v774 = vcombine.high %v756, 0.0
    %v776 = vunpack.c.l.s4 1983009808
    %v777 = vunpack.c.0.s8 %v776
    %v778 = vlaneseq
    %v779 = vshrl.u32 %v778, 7
    %v780 = vsub.s32 %v777, %v779
    %v781 = vrot.slane %v756, %v780
    %v783 = vunpack.c.l.s4 1983009808
    %v784 = vunpack.c.0.s8 %v783
    %v785 = vlaneseq
    %v786 = vshrl.u32 %v785, 7
    %v787 = vsub.s32 %v784, %v786
    %v788 = vrot.slane %v774, %v787
    %v789 = vcombine.low %v766, %v781
    %v790 = vcombine.high %v766, %v781
    %v792 = vunpack.c.l.s4 1934713408
    %v793 = vunpack.c.0.s8 %v792
    %v794 = vlaneseq
    %v795 = vshrl.u32 %v794, 7
    %v796 = vsub.s32 %v793, %v795
    %v797 = vrot.slane %v789, %v796
    %v799 = vunpack.c.l.s4 1934713408
    %v800 = vunpack.c.0.s8 %v799
    %v801 = vlaneseq
    %v802 = vshrl.u32 %v801, 7
    %v803 = vsub.s32 %v800, %v802
    %v804 = vrot.slane %v790, %v803
    %v805 = vcombine.low %v773, %v788
    %v806 = vcombine.high %v773, %v788
    %v808 = vunpack.c.l.s4 1934713408
    %v809 = vunpack.c.0.s8 %v808
    %v810 = vlaneseq
    %v811 = vshrl.u32 %v810, 7
    %v812 = vsub.s32 %v809, %v811
    %v813 = vrot.slane %v805, %v812
    %v815 = vunpack.c.l.s4 1934713408
    %v816 = vunpack.c.0.s8 %v815
    %v817 = vlaneseq
    %v818 = vshrl.u32 %v817, 7
    %v819 = vsub.s32 %v816, %v818
    %v820 = vrot.slane %v806, %v819
    %v821 = vcombine.high %v797, 0.0
    %v822 = vcombine.high %v804, 0.0
    %v823 = vcombine.high %v813, 0.0
    %v824 = vcombine.high %v820, 0.0
    %825 = vst [vmem:[#allocation9] sm:$0x3] %v797
    %826 = vst [vmem:[#allocation9 + $0x2] sm:$0x3] %v821
    %827 = vst [vmem:[#allocation9 + $0x4] sm:$0x3] %v804
    %828 = vst [vmem:[#allocation9 + $0x6] sm:$0x3] %v822
    %829 = vst [vmem:[#allocation9 + $0x8] sm:$0x3] %v813
    %830 = vst [vmem:[#allocation9 + $0xa] sm:$0x3] %v823
    %831 = vst [vmem:[#allocation9 + $0xc] sm:$0x3] %v820
    %832 = vst [vmem:[#allocation9 + $0xe] sm:$0x3] %v824
    // Predicated region
    $region38: #{tpu_custom_call.1} parent=1 // pred_check
      _
    $region39: #{tpu_custom_call.1} parent=1 // pred_check_branch
      %834 = sbr.rel (0) target = $region41
    $region40: #{tpu_custom_call.1} parent=1 // pred_region
      %s836 = ssub.s32 256, 256
      %837 = vsyncadd [#allocation5], %s836
      %s838 = sshll.u32 [#allocation9], 4
      %s839 = int_to_ptr.vmem [resolvable:$true] %s838
      %844 = dma.vmem_to_hbm [thread:$0]  %s839, 256, %s5, [#allocation5], 32, 32, 2
    $region41: #{tpu_custom_call.1} parent=1 // pred_fallthru
      _
    // Predicated region
    $region42: #{tpu_custom_call.1} parent=1 // pred_check
      _
    $region43: #{tpu_custom_call.1} parent=1 // pred_check_branch
      %846 = sbr.rel (0) target = $region45
    $region44: #{tpu_custom_call.1} parent=1 // pred_region
      %s848 = ssub.s32 256, 256
      %849 = vsyncadd [#allocation11], %s848
      %s850 = sshll.u32 [#allocation10], 4
      %s851 = int_to_ptr.vmem [resolvable:$true] %s850
      %856 = dma.vmem_to_hbm [thread:$0]  %s851, 256, %s6, [#allocation11], 32, 32, 2
    $region45: #{tpu_custom_call.1} parent=1 // pred_fallthru
      _
    // Predicated region
    $region46: #{tpu_custom_call.1} parent=1 // pred_check
      _
    $region47: #{tpu_custom_call.1} parent=1 // pred_check_branch
      %858 = sbr.rel (0) target = $region49
    $region48: #{tpu_custom_call.1} parent=1 // pred_region
      %859 = dma.done [#allocation5], 256
    $region49: #{tpu_custom_call.1} parent=1 // pred_fallthru
      _
    // Predicated region
    $region50: #{tpu_custom_call.1} parent=1 // pred_check
      _
    $region51: #{tpu_custom_call.1} parent=1 // pred_check_branch
      %861 = sbr.rel (0) target = $region53
    $region52: #{tpu_custom_call.1} parent=1 // pred_region
      %862 = dma.done [#allocation11], 256
    $region53: #{tpu_custom_call.1} parent=1 // pred_fallthru
      _
    %863 = vsyncpa [#allocation4], 1
    %864 = vsyncpa [#allocation7], 1
    %865 = vsyncpa [#allocation5], 1
    %866 = vsyncpa [#allocation11], 1

</llo_original>
